<compile_context>
chip_gen: v7x
topology: tpu7x:2x2x1
jax: 0.10.0
libtpu: 0.0.40
codegen_flags: <defaults>
</compile_context>

<pallas_src>
import functools

import jax
import jax.numpy as jnp
from jax.experimental import pallas as pl
from jax.experimental.pallas import tpu as pltpu

_EPS = 1e-9
_EPS2 = _EPS * _EPS            # epsilon in the squared-magnitude domain

_ROW_ALIGN = 8
_LANE_ALIGN = 128
_MAX_LANE_TILE = 16384                       # 64 KiB / row in f32
_TARGET_BLOCK_BYTES = 6 * 1024 * 1024        # 4-8 MiB sweet spot (v7x HBM)
_VMEM_LIMIT_BYTES = 48 * 1024 * 1024


# ---------------------------------------------------------------------------
# pltpu.roll direction probe (cached).  We only rely on roll being a rotation;
# whether out[j] == x[j - shift] (numpy convention) or x[j + shift] is measured
# once with a tiny kernel so the main kernel is convention-independent.
# ---------------------------------------------------------------------------
_NP_ROLL = None


def _roll_is_numpy_convention() -> bool:
    global _NP_ROLL
    if _NP_ROLL is None:
        def probe(x_ref, o_ref):
            o_ref[...] = pltpu.roll(x_ref[...], shift=1, axis=1)

        x = jnp.broadcast_to(jnp.arange(128, dtype=jnp.float32), (8, 128))
        y = pl.pallas_call(
            probe, out_shape=jax.ShapeDtypeStruct((8, 128), jnp.float32)
        )(x)
        # numpy convention: out[0, 1] == x[0, 0] == 0
        _NP_ROLL = bool(float(y[0, 1]) == 0.0)
    return _NP_ROLL


def _make_kernel(w, b, shift_prev, shift_next):
    """w, b: tuples of 4 floats (compile-time constants).  shift_prev /
    shift_next: static pltpu.roll shifts fetching lane j-1 / j+1."""
    w0, w1, w2, w3 = (float(v) for v in w)
    b0, b1, b2, b3 = (float(v) for v in b)

    def kernel(x_ref, o_ref):
        x = x_ref[...]                       # (R, L): even lane = Re, odd = Im
        lanes = x.shape[-1]

        # lane-parity mask as a single (1, L) row; jnp.where broadcasts it.
        lane_idx = jax.lax.broadcasted_iota(jnp.int32, (1, lanes), 1)
        is_even = (lane_idx & 1) == 0

        prev = pltpu.roll(x, shift=shift_prev, axis=1)   # value at lane j-1
        nxt = pltpu.roll(x, shift=shift_next, axis=1)    # value at lane j+1
        # Signed partner: real (even) lanes take -Im, imag (odd) lanes take +Re.
        # The sign cancels in q*q, and folds the output sign select away.
        q = jnp.where(is_even, -nxt, prev)

        # |S|^2, 1/|S|, |S|  (pair-symmetric -> identical on both lanes)
        s2 = x * x + q * q
        inv_mag = jax.lax.rsqrt(s2 + _EPS2)              # ~ 1 / (|S| + eps)
        mag = s2 * inv_mag                               # ~ |S|

        # inner model: Linear(1 -> 4) on the magnitude channel (const weights)
        m0 = mag * w0 + b0    # -> sigmoid-bounded magnitude mask
        m1 = mag * w1 + b1    # -> Q (additive residual)
        m2 = mag * w2 + b2    # -> P real
        m3 = mag * w3 + b3    # -> P imag

        # bounding_function = sigmoid (single EUP tanh)
        bounded = 0.5 * jnp.tanh(0.5 * m0) + 0.5

        # 1/|P| and S_mag = relu(bounded * |S| + Q)
        inv_pmag = jax.lax.rsqrt(m2 * m2 + m3 * m3 + _EPS2)
        s_mag = jnp.maximum(bounded * mag + m1, 0.0)

        # out_re = S_mag * (Xcos*Mcos - Xsin*Msin)
        # out_im = S_mag * (Xcos*Msin + Xsin*Mcos)
        # On the interleaved layout with the signed partner q this collapses to
        #   out[j] = (S_mag/(|S|*|P|)) * (x[j]*m2 + q[j]*m3)
        scale = s_mag * inv_mag * inv_pmag
        o_ref[...] = scale * (x * m2 + q * m3)

    return kernel


@functools.partial(
    jax.jit, static_argnames=("w", "b", "np_roll", "max_block_bytes"))
def _decoupled_stft_pallas(x, *, w, b, np_roll, max_block_bytes):
    B, Fr, T, two = x.shape
    assert two == 2
    M, L = B * Fr, 2 * T
    xs = x.reshape(M, L)                     # free view: re/im interleaved
    itemsize = xs.dtype.itemsize

    # ---- tile selection (lane-dense, no pre-padding, ragged handled by Pallas)
    # lane_tile: largest multiple of 128 that is <= L (and <= cap).
    lane_tile = min((L // _LANE_ALIGN) * _LANE_ALIGN, _MAX_LANE_TILE)
    assert lane_tile % 2 == 0                # keeps re/im pairs inside a block

    # row_tile: from the byte target only (no artificial cap); full-dim if the
    # whole row extent fits (avoids a ragged row block entirely).
    rows_target = max(
        _ROW_ALIGN,
        (max_block_bytes // (lane_tile * itemsize)) // _ROW_ALIGN * _ROW_ALIGN)
    row_tile = M if M <= rows_target else rows_target

    grid_r = pl.cdiv(M, row_tile)
    grid_l = pl.cdiv(L, lane_tile)

    # v7x has 2 TensorCores: make sure a "parallel" axis has >= 2 steps when
    # the input allows it.
    if grid_r * grid_l == 1 and M >= 2 * _ROW_ALIGN:
        row_tile = -(-((M + 1) // 2) // _ROW_ALIGN) * _ROW_ALIGN
        grid_r = pl.cdiv(M, row_tile)

    if np_roll:
        shift_prev, shift_next = 1, lane_tile - 1
    else:
        shift_prev, shift_next = lane_tile - 1, 1

    spec = pl.BlockSpec((row_tile, lane_tile), lambda i, j: (i, j))

    out = pl.pallas_call(
        _make_kernel(w, b, shift_prev, shift_next),
        out_shape=jax.ShapeDtypeStruct((M, L), xs.dtype),
        grid_spec=pltpu.PrefetchScalarGridSpec(
            num_scalar_prefetch=0,
            grid=(grid_r, grid_l),
            in_specs=[spec],
            out_specs=spec,
        ),
        compiler_params=pltpu.CompilerParams(
            dimension_semantics=("parallel", "parallel"),
            vmem_limit_bytes=_VMEM_LIMIT_BYTES,
        ),
    )(xs)

    return out.reshape(B, Fr, T, 2)


def _reference(stft_representation, w, b):
    """Pure-JAX mirror of the PyTorch forward (sigmoid bounding, full path)."""
    re, im = stft_representation[..., 0], stft_representation[..., 1]
    mag = jnp.sqrt(re * re + im * im)
    x_cos = re / (mag + _EPS)
    x_sin = im / (mag + _EPS)
    out = mag[..., None] * w[0] + b[0]                 # (..., 4) linear(1->4)
    bounded = jax.nn.sigmoid(out[..., 0])
    q = out[..., 1]
    p_re, p_im = out[..., 2], out[..., 3]
    p_mag = jnp.sqrt(p_re * p_re + p_im * p_im)
    m_cos = p_re / (p_mag + _EPS)
    m_sin = p_im / (p_mag + _EPS)
    s_mag = jnp.maximum(bounded * mag + q, 0.0)
    phase_cos = x_cos * m_cos - x_sin * m_sin
    phase_sin = x_cos * m_sin + x_sin * m_cos
    return s_mag[..., None] * jnp.stack([phase_cos, phase_sin], axis=-1)


_reference_jit = jax.jit(_reference)


def decoupled_stft_prediction(stft_representation, w, b, *,
                              max_block_bytes=_TARGET_BLOCK_BYTES):
    """stft_representation: (B, F, T, 2) float32; w, b: (1, 4) float32."""
    B, Fr, T, two = stft_representation.shape
    assert two == 2
    if 2 * T < _LANE_ALIGN:
        # TODO(synk): tiny-frame STFTs (2*T < 128 lanes) fall back to the fused
        # XLA elementwise path; the Pallas path targets realistic STFT sizes.
        return _reference_jit(stft_representation, w, b)
    w_t = tuple(float(v) for v in jnp.asarray(w).reshape(-1))
    b_t = tuple(float(v) for v in jnp.asarray(b).reshape(-1))
    assert len(w_t) == 4 and len(b_t) == 4
    return _decoupled_stft_pallas(
        stft_representation, w=w_t, b=b_t,
        np_roll=_roll_is_numpy_convention(),
        max_block_bytes=int(max_block_bytes))


if __name__ == "__main__":
    key = jax.random.PRNGKey(0)
    k1, k2, k3, k4 = jax.random.split(key, 4)

    # Deterministic inner-model (Linear(1 -> 4)) parameters.
    w = jnp.array([[0.5, -0.25, 0.75, 0.1]], dtype=jnp.float32)   # (1, 4)
    b = jnp.array([[0.1, 0.2, -0.3, 0.4]], dtype=jnp.float32)     # (1, 4)

    def check(x, name, **kw):
        out = jax.block_until_ready(decoupled_stft_prediction(x, w, b, **kw))
        ref = _reference(x, w, b)
        assert out.shape == x.shape, name
        assert jnp.allclose(out, ref, atol=1e-4, rtol=1e-4), f"mismatch ({name})"

    # Aligned shape, 2-step row grid (dual-TC split): (B*F, 2T) = (16, 128).
    check(jax.random.normal(k1, (2, 8, 64, 2), dtype=jnp.float32), "aligned")
    # Ragged trailing lane block (L = 194 -> one full 128 block + partial).
    check(jax.random.normal(k2, (1, 5, 97, 2), dtype=jnp.float32), "ragged-lanes")
    # Full-dim row block that is not a multiple of 8 (M = 26) + ragged lanes.
    check(jax.random.normal(k3, (2, 13, 96, 2), dtype=jnp.float32), "odd-rows")
    # Ragged trailing row block (force small blocks so M=60 splits into 8-row
    # blocks with a 4-row remainder).
    check(jax.random.normal(k4, (4, 15, 64, 2), dtype=jnp.float32), "ragged-rows",
          max_block_bytes=4096)
    # Tiny-frame fallback path (2*T < 128 lanes).
    check(jax.random.normal(k1, (1, 5, 33, 2), dtype=jnp.float32), "tiny-fallback")

    print("KERNEL_OK")
</pallas_src>

<mosaic_0001>
module attributes {stable_mosaic.version = 11 : i64} {
  func.func @probe(%arg0: memref<8x128xf32, #tpu.memory_space<vmem>>, %arg1: memref<8x128xf32, #tpu.memory_space<vmem>>) attributes {dimension_semantics = [], scalar_prefetch = 0 : i64, scratch_operands = 0 : i64, tpu.core_type = #tpu.core_type<tc>} {
    %c0 = arith.constant 0 : index
    %c0_0 = arith.constant 0 : index
    %0 = vector.load %arg0[%c0, %c0_0] : memref<8x128xf32, #tpu.memory_space<vmem>>, vector<8x128xf32>
    %c1_i32 = arith.constant 1 : i32
    %1 = tpu.dynamic_rotate %0 by %c1_i32 dim 1 : vector<8x128xf32>, i32 -> vector<8x128xf32>
    %c0_1 = arith.constant 0 : index
    %c0_2 = arith.constant 0 : index
    %2 = vector.load %arg1[%c0_1, %c0_2] : memref<8x128xf32, #tpu.memory_space<vmem>>, vector<8x128xf32>
    tpu.vector_store %arg1[%c0_1, %c0_2], %1 {strides = array<i32>} : memref<8x128xf32, #tpu.memory_space<vmem>>, vector<8x128xf32>,
    return
  }
}

</mosaic_0001>

<llo_original>
// kernel: tpu_custom_call.1
$region0: #{tpu_custom_call.1}
  #allocation0 [shape = 'u32[]', space=smem, size = 0x4, offset = 0x4, fixed_abs, tag = 'smem constant byte address 0x4 - core index']
  #allocation1 [shape = 'u32[144,128]{1,0:T(1,128)}', space=vmem, size = 0x12000, scoped, tag = 'internal scratch']
  %s0 = inlined_call_operand.hbm [shape: f32[8,128], index: 0, kind: input, shape index: {}]
  %s1 = inlined_call_operand.hbm [shape: f32[8,128], index: 1, kind: output, shape index: {}]
  %s2 = sld [smem:[#allocation0]]
  $region18: #{tpu_custom_call.1} parent=0
    _
  %s4 = ssub.s32 1, %s2
  %s5 = scalar_select 0, %s4, %s2
  $region1: #{tpu_custom_call.1} parent=0
    #allocation2 [shape = 'u8[4096]{0}', space=vmem, size = 0x1000, scoped, tag = 'input window, operand 0, single buffered']
    #allocation3 [shape = 's32[1]{0}', space=sflag, size = 0x4, scoped, tag = 'scoped memory for tpu_custom_call.1']
    #allocation4 [shape = 's32[1]{0}', space=sflag, size = 0x4, scoped, tag = 'scoped memory for tpu_custom_call.1']
    #allocation5 [shape = 'u8[4096]{0}', space=vmem, size = 0x1000, scoped, tag = 'output window, operand 0, single buffered']
    %6 = vsyncpa [#allocation3], 0
    %7 = vsyncpa [#allocation4], 0
    // Predicated region
    $region2: #{tpu_custom_call.1} parent=1 // pred_check
      _
    $region3: #{tpu_custom_call.1} parent=1 // pred_check_branch
      %9 = sbr.rel (0) target = $region5
    $region4: #{tpu_custom_call.1} parent=1 // pred_region
      %s11 = ssub.s32 128, 128
      %12 = vsyncadd [#allocation3], %s11
      %s14 = sshll.u32 [#allocation2], 4
      %s15 = int_to_ptr.vmem [resolvable:$true] %s14
      %17 = dma.hbm_to_vmem [thread:$0]  %s0, 128, %s15, [#allocation3]
    $region5: #{tpu_custom_call.1} parent=1 // pred_fallthru
      _
    // Predicated region
    $region6: #{tpu_custom_call.1} parent=1 // pred_check
      _
    $region7: #{tpu_custom_call.1} parent=1 // pred_check_branch
      %19 = sbr.rel (0) target = $region9
    $region8: #{tpu_custom_call.1} parent=1 // pred_region
      %20 = dma.done [#allocation3], 128
    $region9: #{tpu_custom_call.1} parent=1 // pred_fallthru
      _
    %v21 = vld [vmem:[#allocation2] sm:$0xff]
    %22 = vrot.lane.b32.xlu0 %v21, 1
    %v23 = vpop.permute.xlu0 %22
    %24 = vst [vmem:[#allocation5] sm:$0xff] %v23
    // Predicated region
    $region10: #{tpu_custom_call.1} parent=1 // pred_check
      _
    $region11: #{tpu_custom_call.1} parent=1 // pred_check_branch
      %26 = sbr.rel (0) target = $region13
    $region12: #{tpu_custom_call.1} parent=1 // pred_region
      %s28 = ssub.s32 128, 128
      %29 = vsyncadd [#allocation4], %s28
      %s31 = sshll.u32 [#allocation5], 4
      %s32 = int_to_ptr.vmem [resolvable:$true] %s31
      %34 = dma.vmem_to_hbm [thread:$0]  %s32, 128, %s1, [#allocation4]
    $region13: #{tpu_custom_call.1} parent=1 // pred_fallthru
      _
    // Predicated region
    $region14: #{tpu_custom_call.1} parent=1 // pred_check
      _
    $region15: #{tpu_custom_call.1} parent=1 // pred_check_branch
      %36 = sbr.rel (0) target = $region17
    $region16: #{tpu_custom_call.1} parent=1 // pred_region
      %37 = dma.done [#allocation4], 128
    $region17: #{tpu_custom_call.1} parent=1 // pred_fallthru
      _
    %38 = vsyncpa [#allocation3], 1
    %39 = vsyncpa [#allocation4], 1

</llo_original>
